<compile_context>
chip_gen: v5e
topology: v5e:2x2
jax: 0.10.0
libtpu: 0.0.40
codegen_flags: <defaults>
</compile_context>

<pallas_src>
import jax
import jax.numpy as jnp
from jax.experimental import pallas as pl
from jax.experimental.pallas import tpu as pltpu

_MiB = 1024 * 1024


def _round_up(x, m):
    return ((x + m - 1) // m) * m


# -----------------------------------------------------------------------------
# Kernel
# -----------------------------------------------------------------------------
def cdae_kernel(inv_item_ref, r_ref, ue_ref, we_ref, be_ref, wd_ref, bd_ref,
                out_ref):
    # Rating tile streams in as bf16 (halves the dominant DMA); elementwise
    # math runs in f32 (required on v5e's VPU, harmless on v6e/v7x).
    r = r_ref[...].astype(jnp.float32)                      # (TB, Ip)

    # Factored normalization: reference divides by sqrt(||row|| * ||col||).
    # Per-column factor (||col||^-1/2, zero-guarded) comes in precomputed; the
    # per-row factor needs only a (TB, 1) sqrt + rsqrt here (EUP work ~TB
    # instead of TB*Ip).  Guard before rsqrt; r == 0 wherever either norm is 0,
    # so the zeroed factor matches the reference's masked-fill semantics.
    usq = jnp.sum(r * r, axis=1, keepdims=True)             # ||row||^2
    inv_user = jnp.where(usq == 0.0, jnp.float32(0.0),
                         jax.lax.rsqrt(jnp.sqrt(usq)))      # ||row||^-1/2
    rn = ((r * inv_user) * inv_item_ref[...]).astype(jnp.bfloat16)

    # eval-mode dropout == identity
    # TODO(synk): training-mode dropout (corruption) omitted.

    # encoder: rn (TB, Ip) . we (Hp, Ip), contract over Ip -> (TB, Hp) f32
    enc = jax.lax.dot_general(
        rn, we_ref[...],
        dimension_numbers=(((1,), (1,)), ((), ())),
        preferred_element_type=jnp.float32)
    enc = jnp.tanh(enc + be_ref[...] + ue_ref[...]).astype(jnp.bfloat16)

    # decoder: enc (TB, Hp) . wd (Ip, Hp), contract over Hp -> (TB, Ip) f32
    dec = jax.lax.dot_general(
        enc, wd_ref[...],
        dimension_numbers=(((1,), (1,)), ((), ())),
        preferred_element_type=jnp.float32)
    z = dec + bd_ref[...]
    # sigmoid(z) == 0.5 * (1 + tanh(z/2)) -- single EUP pass over the big tile.
    out_ref[...] = 0.5 * (1.0 + jnp.tanh(0.5 * z))


# -----------------------------------------------------------------------------
# One-time parameter preparation (hoisted out of the per-call path)
# -----------------------------------------------------------------------------
def prepare_cdae_params(params):
    """bf16 weight casts + lane/sublane zero padding, done once.

    Padded hidden units see zero weights/bias/embedding -> tanh(0)=0 -> zero
    decoder contribution; padded item columns have zero weights/inv_item and
    are sliced off the output.  So padding does not change the result.
    """
    H, I = params["enc_w"].shape
    U = params["user_emb"].shape[0]
    Hp = _round_up(H, 128)     # lane-dense encoder intermediates
    Ip = _round_up(I, 256)     # lane-dense (unmasked) output stores

    we = jnp.zeros((Hp, Ip), jnp.bfloat16)
    we = we.at[:H, :I].set(params["enc_w"].astype(jnp.bfloat16))
    wd = jnp.zeros((Ip, Hp), jnp.bfloat16)
    wd = wd.at[:I, :H].set(params["dec_w"].astype(jnp.bfloat16))
    be = jnp.zeros((1, Hp), jnp.float32)
    be = be.at[0, :H].set(params["enc_b"].astype(jnp.float32))
    bd = jnp.zeros((1, Ip), jnp.float32)
    bd = bd.at[0, :I].set(params["dec_b"].astype(jnp.float32))
    ue = jnp.zeros((U, Hp), jnp.float32)
    ue = ue.at[:, :H].set(params["user_emb"].astype(jnp.float32))

    return {"we": we, "wd": wd, "be": be, "bd": bd, "user_emb": ue,
            "H": H, "I": I, "Hp": Hp, "Ip": Ip}


# -----------------------------------------------------------------------------
# pallas_call builder + forward wrapper
# -----------------------------------------------------------------------------
def _cdae_pallas_call(tb, Bp, Hp, Ip, vmem_limit_bytes,
                      single_buffer_residents):
    resident_kwargs = (
        {"pipeline_mode": pl.Buffered(1)} if single_buffer_residents else {})

    in_specs = [
        pl.BlockSpec((1, Ip), lambda b: (0, 0), **resident_kwargs),   # inv_item
        pl.BlockSpec((tb, Ip), lambda b: (b, 0)),                     # rating (bf16)
        pl.BlockSpec((tb, Hp), lambda b: (b, 0)),                     # user emb
        pl.BlockSpec((Hp, Ip), lambda b: (0, 0), **resident_kwargs),  # enc_w
        pl.BlockSpec((1, Hp), lambda b: (0, 0), **resident_kwargs),   # enc_b
        pl.BlockSpec((Ip, Hp), lambda b: (0, 0), **resident_kwargs),  # dec_w
        pl.BlockSpec((1, Ip), lambda b: (0, 0), **resident_kwargs),   # dec_b
    ]
    return pl.pallas_call(
        cdae_kernel,
        out_shape=jax.ShapeDtypeStruct((Bp, Ip), jnp.float32),
        grid=(Bp // tb,),
        in_specs=in_specs,
        out_specs=pl.BlockSpec((tb, Ip), lambda b: (b, 0)),
        compiler_params=pltpu.CompilerParams(
            dimension_semantics=("parallel",),
            vmem_limit_bytes=vmem_limit_bytes),
    )


def cdae_forward(user_id, rating_matrix, prep, *, max_block_b=512,
                 pipeline_vmem_budget=36 * _MiB):
    """user_id: (B,) int32, rating_matrix: (B, num_items) f32."""
    B, I = rating_matrix.shape
    assert I == prep["I"], "rating_matrix item dim does not match prepared params"
    Hp, Ip = prep["Hp"], prep["Ip"]

    # Stream the rating matrix as bf16 (exact for 0/1 ratings; halves the
    # dominant per-step HBM read), padded to the lane-dense item width.
    r_bf = rating_matrix.astype(jnp.bfloat16)
    if Ip != I:
        r_bf = jnp.pad(r_bf, ((0, 0), (0, Ip - I)))

    # Per-column factor over the FULL batch, fused with guard + rsqrt so the
    # kernel only handles the per-row factor.
    # TODO(synk): this is a second HBM pass over the rating matrix; cache
    # inv_item across calls if the rating matrix is static.
    isq = jnp.sum(jnp.square(r_bf.astype(jnp.float32)), axis=0, keepdims=True)
    inv_item = jnp.where(isq == 0.0, jnp.float32(0.0),
                         jax.lax.rsqrt(jnp.sqrt(isq)))       # (1, Ip) ||col||^-1/2

    # --- batch tile from an explicit VMEM budget (safe for v7x's 64 MiB) ----
    # Per-row pipeline bytes: double-buffered rating(bf16) + out(f32) + ue(f32).
    bytes_per_row = 2 * (Ip * 2 + Ip * 4 + Hp * 4)
    # Residents counted double-buffered (conservative in case the single-buffer
    # request falls back).
    resident_bytes = 2 * (Hp * Ip * 2 + Ip * Hp * 2 + Ip * 4 + Hp * 4 + Ip * 4)
    tile_budget = max(pipeline_vmem_budget - resident_bytes, 0)
    tb_cap = max(16, (tile_budget // bytes_per_row) // 16 * 16)
    # bf16 rating rows pack two per sublane -> keep tb a multiple of 16.
    tb = max(16, min(max_block_b, _round_up(B, 16), tb_cap))
    Bp = _round_up(B, tb)
    # TODO(synk): for very large num_items also tile the item axis (keeping
    # the weights resident across it) and prefer an even tile count so both
    # v7x TensorCores get work.

    if Bp != B:
        r_bf = jnp.pad(r_bf, ((0, Bp - B), (0, 0)))
        user_id = jnp.pad(user_id, (0, Bp - B))

    ue = prep["user_emb"][user_id]                            # (Bp, Hp) f32

    need = resident_bytes + tb * bytes_per_row
    vmem_limit = int(min(max(need * 3 // 2, 32 * _MiB), 56 * _MiB))

    args = (inv_item, r_bf, ue, prep["we"], prep["be"], prep["wd"], prep["bd"])
    try:
        out = _cdae_pallas_call(tb, Bp, Hp, Ip, vmem_limit, True)(*args)
    except Exception:
        # pl.Buffered(1) unavailable on this jax -> default double buffering
        # (the previously validated configuration).
        out = _cdae_pallas_call(tb, Bp, Hp, Ip, vmem_limit, False)(*args)

    return out[:B, :I]


# -----------------------------------------------------------------------------
# Pure-JAX f32 reference mirroring the PyTorch forward (eval mode)
# -----------------------------------------------------------------------------
def cdae_reference(user_id, rating_matrix, params):
    r = rating_matrix
    user_deg = jnp.linalg.norm(r, ord=2, axis=1).reshape(-1, 1)
    item_deg = jnp.linalg.norm(r, ord=2, axis=0).reshape(1, -1)
    normalize = jnp.sqrt(user_deg @ item_deg)
    normalize = jnp.where(normalize == 0.0, 1e-10, normalize)
    rn = r / normalize
    enc = rn @ params["enc_w"].T + params["enc_b"] + params["user_emb"][user_id]
    enc = jnp.tanh(enc)
    dec = enc @ params["dec_w"].T + params["dec_b"]
    return jax.nn.sigmoid(dec)


if __name__ == "__main__":
    num_users, num_items, hidden_dim, batch = 16, 256, 32, 8

    key = jax.random.PRNGKey(0)
    k1, k2, k3, k4, k5, k6, k7 = jax.random.split(key, 7)

    params = {
        "user_emb": jax.random.normal(k1, (num_users, hidden_dim), jnp.float32) * 0.1,
        "enc_w": jax.random.normal(k2, (hidden_dim, num_items), jnp.float32) * 0.05,
        "enc_b": jax.random.normal(k3, (hidden_dim,), jnp.float32) * 0.01,
        "dec_w": jax.random.normal(k4, (num_items, hidden_dim), jnp.float32) * 0.05,
        "dec_b": jax.random.normal(k5, (num_items,), jnp.float32) * 0.01,
    }

    user_id = jax.random.randint(k6, (batch,), 0, num_users, dtype=jnp.int32)
    # Sparse-ish 0/1 rating matrix (zero rows/columns tolerated via the
    # zero-guarded rsqrt factors; 0/1 values are exact in bf16).
    rating = (jax.random.uniform(k7, (batch, num_items)) > 0.7).astype(jnp.float32)

    prep = prepare_cdae_params(params)          # one-time parameter prep
    out = cdae_forward(user_id, rating, prep)
    out = jax.block_until_ready(out)

    ref = cdae_reference(user_id, rating, params)
    assert out.shape == (batch, num_items)
    # bf16 MXU inputs (f32 accumulation) -> relaxed tolerance vs f32 reference.
    assert jnp.allclose(out, ref, atol=1e-2, rtol=1e-2), "mismatch vs reference"

    print("KERNEL_OK")
</pallas_src>

<mosaic_0001>
module attributes {stable_mosaic.version = 11 : i64} {
  func.func @cdae_kernel(%arg0: i32, %arg1: memref<1x256xf32, #tpu.memory_space<vmem>>, %arg2: memref<16x256xbf16, #tpu.memory_space<vmem>>, %arg3: memref<16x128xf32, #tpu.memory_space<vmem>>, %arg4: memref<128x256xbf16, #tpu.memory_space<vmem>>, %arg5: memref<1x128xf32, #tpu.memory_space<vmem>>, %arg6: memref<256x128xbf16, #tpu.memory_space<vmem>>, %arg7: memref<1x256xf32, #tpu.memory_space<vmem>>, %arg8: memref<16x256xf32, #tpu.memory_space<vmem>>) attributes {dimension_semantics = [#tpu.dimension_semantics<parallel>], iteration_bounds = array<i64: 1>, scalar_prefetch = 0 : i64, scratch_operands = 0 : i64, tpu.core_type = #tpu.core_type<tc>, window_params = [{pipeline_mode = #tpu.pipeline_mode<synchronous>, transform_indices = @transform_0, window_bounds = array<i64: 1, 256>}, {transform_indices = @transform_1, window_bounds = array<i64: 16, 256>}, {transform_indices = @transform_2, window_bounds = array<i64: 16, 128>}, {pipeline_mode = #tpu.pipeline_mode<synchronous>, transform_indices = @transform_3, window_bounds = array<i64: 128, 256>}, {pipeline_mode = #tpu.pipeline_mode<synchronous>, transform_indices = @transform_4, window_bounds = array<i64: 1, 128>}, {pipeline_mode = #tpu.pipeline_mode<synchronous>, transform_indices = @transform_5, window_bounds = array<i64: 256, 128>}, {pipeline_mode = #tpu.pipeline_mode<synchronous>, transform_indices = @transform_6, window_bounds = array<i64: 1, 256>}, {transform_indices = @transform_7, window_bounds = array<i64: 16, 256>}]} {
    %c0 = arith.constant 0 : index
    %c0_0 = arith.constant 0 : index
    %0 = vector.load %arg2[%c0, %c0_0] : memref<16x256xbf16, #tpu.memory_space<vmem>>, vector<16x256xbf16>
    %1 = arith.extf %0 : vector<16x256xbf16> to vector<16x256xf32>
    %2 = arith.mulf %1, %1 : vector<16x256xf32>
    %cst = arith.constant dense<0.000000e+00> : vector<16xf32>
    %3 = vector.multi_reduction <add>, %2, %cst [1] : vector<16x256xf32> to vector<16xf32>
    %4 = vector.shape_cast %3 : vector<16xf32> to vector<16x1xf32>
    %cst_1 = arith.constant 0.000000e+00 : f32
    %5 = vector.broadcast %cst_1 : f32 to vector<16x1xf32>
    %6 = arith.cmpf oeq, %4, %5 : vector<16x1xf32>
    %7 = math.sqrt %4 : vector<16x1xf32>
    %8 = math.rsqrt %7 : vector<16x1xf32>
    %cst_2 = arith.constant 0.000000e+00 : f32
    %9 = vector.broadcast %cst_2 : f32 to vector<16x1xf32>
    %10 = arith.select %6, %9, %8 : vector<16x1xi1>, vector<16x1xf32>
    %11 = vector.broadcast %10 : vector<16x1xf32> to vector<16x256xf32>
    %12 = arith.mulf %1, %11 : vector<16x256xf32>
    %c0_3 = arith.constant 0 : index
    %c0_4 = arith.constant 0 : index
    %13 = vector.load %arg1[%c0_3, %c0_4] : memref<1x256xf32, #tpu.memory_space<vmem>>, vector<1x256xf32>
    %14 = vector.broadcast %13 : vector<1x256xf32> to vector<16x256xf32>
    %15 = arith.mulf %12, %14 : vector<16x256xf32>
    %16 = arith.truncf %15 : vector<16x256xf32> to vector<16x256xbf16>
    %c0_5 = arith.constant 0 : index
    %c0_6 = arith.constant 0 : index
    %17 = vector.load %arg4[%c0_5, %c0_6] : memref<128x256xbf16, #tpu.memory_space<vmem>>, vector<128x256xbf16>
    %cst_7 = arith.constant dense<0.000000e+00> : vector<16x128xf32>
    %18 = tpu.matmul %16, %17, %cst_7 {dimension_numbers = #tpu.dot_dimension_numbers<[1], [1], [0], [0], [0, 0, 1, 0], [], []>} : vector<16x256xbf16>, vector<128x256xbf16>, vector<16x128xf32> -> vector<16x128xf32>
    %c0_8 = arith.constant 0 : index
    %c0_9 = arith.constant 0 : index
    %19 = vector.load %arg5[%c0_8, %c0_9] : memref<1x128xf32, #tpu.memory_space<vmem>>, vector<1x128xf32>
    %20 = vector.broadcast %19 : vector<1x128xf32> to vector<16x128xf32>
    %21 = arith.addf %18, %20 : vector<16x128xf32>
    %c0_10 = arith.constant 0 : index
    %c0_11 = arith.constant 0 : index
    %22 = vector.load %arg3[%c0_10, %c0_11] : memref<16x128xf32, #tpu.memory_space<vmem>>, vector<16x128xf32>
    %23 = arith.addf %21, %22 : vector<16x128xf32>
    %24 = math.tanh %23 : vector<16x128xf32>
    %25 = arith.truncf %24 : vector<16x128xf32> to vector<16x128xbf16>
    %c0_12 = arith.constant 0 : index
    %c0_13 = arith.constant 0 : index
    %26 = vector.load %arg6[%c0_12, %c0_13] : memref<256x128xbf16, #tpu.memory_space<vmem>>, vector<256x128xbf16>
    %cst_14 = arith.constant dense<0.000000e+00> : vector<16x256xf32>
    %27 = tpu.matmul %25, %26, %cst_14 {dimension_numbers = #tpu.dot_dimension_numbers<[1], [1], [0], [0], [0, 0, 1, 0], [], []>} : vector<16x128xbf16>, vector<256x128xbf16>, vector<16x256xf32> -> vector<16x256xf32>
    %c0_15 = arith.constant 0 : index
    %c0_16 = arith.constant 0 : index
    %28 = vector.load %arg7[%c0_15, %c0_16] : memref<1x256xf32, #tpu.memory_space<vmem>>, vector<1x256xf32>
    %29 = vector.broadcast %28 : vector<1x256xf32> to vector<16x256xf32>
    %30 = arith.addf %27, %29 : vector<16x256xf32>
    %cst_17 = arith.constant 5.000000e-01 : f32
    %31 = vector.broadcast %cst_17 : f32 to vector<16x256xf32>
    %32 = arith.mulf %31, %30 : vector<16x256xf32>
    %33 = math.tanh %32 : vector<16x256xf32>
    %cst_18 = arith.constant 1.000000e+00 : f32
    %34 = vector.broadcast %cst_18 : f32 to vector<16x256xf32>
    %35 = arith.addf %34, %33 : vector<16x256xf32>
    %cst_19 = arith.constant 5.000000e-01 : f32
    %36 = vector.broadcast %cst_19 : f32 to vector<16x256xf32>
    %37 = arith.mulf %36, %35 : vector<16x256xf32>
    %c0_20 = arith.constant 0 : index
    %c0_21 = arith.constant 0 : index
    %38 = vector.load %arg8[%c0_20, %c0_21] : memref<16x256xf32, #tpu.memory_space<vmem>>, vector<16x256xf32>
    tpu.vector_store %arg8[%c0_20, %c0_21], %37 {strides = array<i32>} : memref<16x256xf32, #tpu.memory_space<vmem>>, vector<16x256xf32>,
    return
  }
  func.func @transform_0(%arg0: i32) -> (i32, i32) {
    %c0_i32 = arith.constant 0 : i32
    %c0_i32_0 = arith.constant 0 : i32
    %c0_i32_1 = arith.constant 0 : i32
    return %c0_i32, %c0_i32_0 : i32, i32
  }
  func.func @transform_1(%arg0: i32) -> (i32, i32) {
    %c0_i32 = arith.constant 0 : i32
    %c0_i32_0 = arith.constant 0 : i32
    return %arg0, %c0_i32 : i32, i32
  }
  func.func @transform_2(%arg0: i32) -> (i32, i32) {
    %c0_i32 = arith.constant 0 : i32
    %c0_i32_0 = arith.constant 0 : i32
    return %arg0, %c0_i32 : i32, i32
  }
  func.func @transform_3(%arg0: i32) -> (i32, i32) {
    %c0_i32 = arith.constant 0 : i32
    %c0_i32_0 = arith.constant 0 : i32
    %c0_i32_1 = arith.constant 0 : i32
    return %c0_i32, %c0_i32_0 : i32, i32
  }
  func.func @transform_4(%arg0: i32) -> (i32, i32) {
    %c0_i32 = arith.constant 0 : i32
    %c0_i32_0 = arith.constant 0 : i32
    %c0_i32_1 = arith.constant 0 : i32
    return %c0_i32, %c0_i32_0 : i32, i32
  }
  func.func @transform_5(%arg0: i32) -> (i32, i32) {
    %c0_i32 = arith.constant 0 : i32
    %c0_i32_0 = arith.constant 0 : i32
    %c0_i32_1 = arith.constant 0 : i32
    return %c0_i32, %c0_i32_0 : i32, i32
  }
  func.func @transform_6(%arg0: i32) -> (i32, i32) {
    %c0_i32 = arith.constant 0 : i32
    %c0_i32_0 = arith.constant 0 : i32
    %c0_i32_1 = arith.constant 0 : i32
    return %c0_i32, %c0_i32_0 : i32, i32
  }
  func.func @transform_7(%arg0: i32) -> (i32, i32) {
    %c0_i32 = arith.constant 0 : i32
    %c0_i32_0 = arith.constant 0 : i32
    return %arg0, %c0_i32 : i32, i32
  }
}

module attributes {stable_mosaic.version = 11 : i64} {
  func.func @cdae_kernel(%arg0: i32, %arg1: memref<1x256xf32, #tpu.memory_space<vmem>>, %arg2: memref<16x256xbf16, #tpu.memory_space<vmem>>, %arg3: memref<16x128xf32, #tpu.memory_space<vmem>>, %arg4: memref<128x256xbf16, #tpu.memory_space<vmem>>, %arg5: memref<1x128xf32, #tpu.memory_space<vmem>>, %arg6: memref<256x128xbf16, #tpu.memory_space<vmem>>, %arg7: memref<1x256xf32, #tpu.memory_space<vmem>>, %arg8: memref<16x256xf32, #tpu.memory_space<vmem>>) attributes {dimension_semantics = [#tpu.dimension_semantics<parallel>], iteration_bounds = array<i64: 1>, scalar_prefetch = 0 : i64, scratch_operands = 0 : i64, tpu.core_type = #tpu.core_type<tc>, window_params = [{pipeline_mode = #tpu.pipeline_mode<synchronous>, transform_indices = @transform_0, window_bounds = array<i64: 1, 256>}, {transform_indices = @transform_1, window_bounds = array<i64: 16, 256>}, {transform_indices = @transform_2, window_bounds = array<i64: 16, 128>}, {pipeline_mode = #tpu.pipeline_mode<synchronous>, transform_indices = @transform_3, window_bounds = array<i64: 128, 256>}, {pipeline_mode = #tpu.pipeline_mode<synchronous>, transform_indices = @transform_4, window_bounds = array<i64: 1, 128>}, {pipeline_mode = #tpu.pipeline_mode<synchronous>, transform_indices = @transform_5, window_bounds = array<i64: 256, 128>}, {pipeline_mode = #tpu.pipeline_mode<synchronous>, transform_indices = @transform_6, window_bounds = array<i64: 1, 256>}, {transform_indices = @transform_7, window_bounds = array<i64: 16, 256>}]} {
    %c0 = arith.constant 0 : index
    %c0_0 = arith.constant 0 : index
    %0 = vector.load %arg2[%c0, %c0_0] : memref<16x256xbf16, #tpu.memory_space<vmem>>, vector<16x256xbf16>
    %1 = arith.extf %0 : vector<16x256xbf16> to vector<16x256xf32>
    %2 = arith.mulf %1, %1 : vector<16x256xf32>
    %cst = arith.constant dense<0.000000e+00> : vector<16xf32>
    %3 = vector.multi_reduction <add>, %2, %cst [1] : vector<16x256xf32> to vector<16xf32>
    %4 = vector.shape_cast %3 : vector<16xf32> to vector<16x1xf32>
    %cst_1 = arith.constant 0.000000e+00 : f32
    %5 = vector.broadcast %cst_1 : f32 to vector<16x1xf32>
    %6 = arith.cmpf oeq, %4, %5 : vector<16x1xf32>
    %7 = math.sqrt %4 : vector<16x1xf32>
    %8 = math.rsqrt %7 : vector<16x1xf32>
    %cst_2 = arith.constant 0.000000e+00 : f32
    %9 = vector.broadcast %cst_2 : f32 to vector<16x1xf32>
    %10 = arith.select %6, %9, %8 : vector<16x1xi1>, vector<16x1xf32>
    %11 = vector.broadcast %10 : vector<16x1xf32> to vector<16x256xf32>
    %12 = arith.mulf %1, %11 : vector<16x256xf32>
    %c0_3 = arith.constant 0 : index
    %c0_4 = arith.constant 0 : index
    %13 = vector.load %arg1[%c0_3, %c0_4] : memref<1x256xf32, #tpu.memory_space<vmem>>, vector<1x256xf32>
    %14 = vector.broadcast %13 : vector<1x256xf32> to vector<16x256xf32>
    %15 = arith.mulf %12, %14 : vector<16x256xf32>
    %16 = arith.truncf %15 : vector<16x256xf32> to vector<16x256xbf16>
    %c0_5 = arith.constant 0 : index
    %c0_6 = arith.constant 0 : index
    %17 = vector.load %arg4[%c0_5, %c0_6] : memref<128x256xbf16, #tpu.memory_space<vmem>>, vector<128x256xbf16>
    %cst_7 = arith.constant dense<0.000000e+00> : vector<16x128xf32>
    %18 = tpu.matmul %16, %17, %cst_7 {dimension_numbers = #tpu.dot_dimension_numbers<[1], [1], [0], [0], [0, 0, 1, 0], [], []>} : vector<16x256xbf16>, vector<128x256xbf16>, vector<16x128xf32> -> vector<16x128xf32>
    %c0_8 = arith.constant 0 : index
    %c0_9 = arith.constant 0 : index
    %19 = vector.load %arg5[%c0_8, %c0_9] : memref<1x128xf32, #tpu.memory_space<vmem>>, vector<1x128xf32>
    %20 = vector.broadcast %19 : vector<1x128xf32> to vector<16x128xf32>
    %21 = arith.addf %18, %20 : vector<16x128xf32>
    %c0_10 = arith.constant 0 : index
    %c0_11 = arith.constant 0 : index
    %22 = vector.load %arg3[%c0_10, %c0_11] : memref<16x128xf32, #tpu.memory_space<vmem>>, vector<16x128xf32>
    %23 = arith.addf %21, %22 : vector<16x128xf32>
    %24 = math.tanh %23 : vector<16x128xf32>
    %25 = arith.truncf %24 : vector<16x128xf32> to vector<16x128xbf16>
    %c0_12 = arith.constant 0 : index
    %c0_13 = arith.constant 0 : index
    %26 = vector.load %arg6[%c0_12, %c0_13] : memref<256x128xbf16, #tpu.memory_space<vmem>>, vector<256x128xbf16>
    %cst_14 = arith.constant dense<0.000000e+00> : vector<16x256xf32>
    %27 = tpu.matmul %25, %26, %cst_14 {dimension_numbers = #tpu.dot_dimension_numbers<[1], [1], [0], [0], [0, 0, 1, 0], [], []>} : vector<16x128xbf16>, vector<256x128xbf16>, vector<16x256xf32> -> vector<16x256xf32>
    %c0_15 = arith.constant 0 : index
    %c0_16 = arith.constant 0 : index
    %28 = vector.load %arg7[%c0_15, %c0_16] : memref<1x256xf32, #tpu.memory_space<vmem>>, vector<1x256xf32>
    %29 = vector.broadcast %28 : vector<1x256xf32> to vector<16x256xf32>
    %30 = arith.addf %27, %29 : vector<16x256xf32>
    %cst_17 = arith.constant 5.000000e-01 : f32
    %31 = vector.broadcast %cst_17 : f32 to vector<16x256xf32>
    %32 = arith.mulf %31, %30 : vector<16x256xf32>
    %33 = math.tanh %32 : vector<16x256xf32>
    %cst_18 = arith.constant 1.000000e+00 : f32
    %34 = vector.broadcast %cst_18 : f32 to vector<16x256xf32>
    %35 = arith.addf %34, %33 : vector<16x256xf32>
    %cst_19 = arith.constant 5.000000e-01 : f32
    %36 = vector.broadcast %cst_19 : f32 to vector<16x256xf32>
    %37 = arith.mulf %36, %35 : vector<16x256xf32>
    %c0_20 = arith.constant 0 : index
    %c0_21 = arith.constant 0 : index
    %38 = vector.load %arg8[%c0_20, %c0_21] : memref<16x256xf32, #tpu.memory_space<vmem>>, vector<16x256xf32>
    tpu.vector_store %arg8[%c0_20, %c0_21], %37 {strides = array<i32>} : memref<16x256xf32, #tpu.memory_space<vmem>>, vector<16x256xf32>,
    return
  }
  func.func @transform_0(%arg0: i32) -> (i32, i32) {
    %c0_i32 = arith.constant 0 : i32
    %c0_i32_0 = arith.constant 0 : i32
    %c0_i32_1 = arith.constant 0 : i32
    return %c0_i32, %c0_i32_0 : i32, i32
  }
  func.func @transform_1(%arg0: i32) -> (i32, i32) {
    %c0_i32 = arith.constant 0 : i32
    %c0_i32_0 = arith.constant 0 : i32
    return %arg0, %c0_i32 : i32, i32
  }
  func.func @transform_2(%arg0: i32) -> (i32, i32) {
    %c0_i32 = arith.constant 0 : i32
    %c0_i32_0 = arith.constant 0 : i32
    return %arg0, %c0_i32 : i32, i32
  }
  func.func @transform_3(%arg0: i32) -> (i32, i32) {
    %c0_i32 = arith.constant 0 : i32
    %c0_i32_0 = arith.constant 0 : i32
    %c0_i32_1 = arith.constant 0 : i32
    return %c0_i32, %c0_i32_0 : i32, i32
  }
  func.func @transform_4(%arg0: i32) -> (i32, i32) {
    %c0_i32 = arith.constant 0 : i32
    %c0_i32_0 = arith.constant 0 : i32
    %c0_i32_1 = arith.constant 0 : i32
    return %c0_i32, %c0_i32_0 : i32, i32
  }
  func.func @transform_5(%arg0: i32) -> (i32, i32) {
    %c0_i32 = arith.constant 0 : i32
    %c0_i32_0 = arith.constant 0 : i32
    %c0_i32_1 = arith.constant 0 : i32
    return %c0_i32, %c0_i32_0 : i32, i32
  }
  func.func @transform_6(%arg0: i32) -> (i32, i32) {
    %c0_i32 = arith.constant 0 : i32
    %c0_i32_0 = arith.constant 0 : i32
    %c0_i32_1 = arith.constant 0 : i32
    return %c0_i32, %c0_i32_0 : i32, i32
  }
  func.func @transform_7(%arg0: i32) -> (i32, i32) {
    %c0_i32 = arith.constant 0 : i32
    %c0_i32_0 = arith.constant 0 : i32
    return %arg0, %c0_i32 : i32, i32
  }
}

</mosaic_0001>

<llo_original>
// kernel: tpu_custom_call.1
$region0: #{tpu_custom_call.1}
  #allocation0 [shape = 'u32[]', space=smem, size = 0x4, offset = 0x4, fixed_abs, tag = 'smem constant byte address 0x4 - core index']
  #allocation1 [shape = 'u32[72,128]{1,0:T(1,128)}', space=vmem, size = 0x9000, scoped, tag = 'internal scratch']
  %s0 = inlined_call_operand.hbm [shape: f32[1,256], index: 0, kind: input, shape index: {}]
  %s1 = inlined_call_operand.hbm [shape: bf16[16,256], index: 1, kind: input, shape index: {}]
  %s2 = inlined_call_operand.hbm [shape: f32[16,128], index: 2, kind: input, shape index: {}]
  %s3 = inlined_call_operand.hbm [shape: bf16[128,256], index: 3, kind: input, shape index: {}]
  %s4 = inlined_call_operand.vmem [shape: f32[1,128], index: 4, kind: input, shape index: {}]
  %s5 = inlined_call_operand.hbm [shape: bf16[256,128], index: 5, kind: input, shape index: {}]
  %s6 = inlined_call_operand.vmem [shape: f32[1,256], index: 6, kind: input, shape index: {}]
  %s7 = inlined_call_operand.hbm [shape: f32[16,256], index: 7, kind: output, shape index: {}]
  %s8 = sld [smem:[#allocation0]]
  $region58: #{tpu_custom_call.1} parent=0
    _
  %s10 = ssub.s32 1, %s8
  %s11 = scalar_select 0, %s10, %s8
  $region1: #{tpu_custom_call.1} parent=0
    #allocation2 [shape = 'u8[1024]{0}', space=vmem, size = 0x400, scoped, tag = 'input window, operand 0, single buffered']
    #allocation3 [shape = 's32[1]{0}', space=sflag, size = 0x4, scoped, tag = 'scoped memory for tpu_custom_call.1']
    #allocation4 [shape = 's32[1]{0}', space=sflag, size = 0x4, scoped, tag = 'scoped memory for tpu_custom_call.1']
    #allocation5 [shape = 'u8[8192]{0}', space=vmem, size = 0x2000, scoped, tag = 'input window, operand 1, single buffered']
    #allocation6 [shape = 's32[1]{0}', space=sflag, size = 0x4, scoped, tag = 'scoped memory for tpu_custom_call.1']
    #allocation7 [shape = 'u8[8192]{0}', space=vmem, size = 0x2000, scoped, tag = 'input window, operand 2, single buffered']
    #allocation8 [shape = 'u8[65536]{0}', space=vmem, size = 0x10000, scoped, tag = 'input window, operand 3, single buffered']
    #allocation9 [shape = 's32[1]{0}', space=sflag, size = 0x4, scoped, tag = 'scoped memory for tpu_custom_call.1']
    #allocation10 [shape = 'u8[65536]{0}', space=vmem, size = 0x10000, scoped, tag = 'input window, operand 5, single buffered']
    #allocation11 [shape = 'u8[16384]{0}', space=vmem, size = 0x4000, scoped, tag = 'output window, operand 0, single buffered']
    %12 = vsyncpa [#allocation3], 0
    %13 = vsyncpa [#allocation6], 0
    %14 = vsyncpa [#allocation9], 0
    %15 = vsyncpa [#allocation4], 0
    // Predicated region
    $region2: #{tpu_custom_call.1} parent=1 // pred_check
      _
    $region3: #{tpu_custom_call.1} parent=1 // pred_check_branch
      %17 = sbr.rel (0) target = $region5
    $region4: #{tpu_custom_call.1} parent=1 // pred_region
      %19 = vsyncadd [#allocation3], 0
      %s21 = sshll.u32 %s0, 4
      %s22 = int_to_ptr.hbm [resolvable:$true] %s21
      %s23 = sshll.u32 [#allocation2], 4
      %s24 = int_to_ptr.vmem [resolvable:$true] %s23
      %26 = dma.hbm_to_vmem [thread:$0]  %s22, 32, %s24, [#allocation3]
    $region5: #{tpu_custom_call.1} parent=1 // pred_fallthru
      _
    // Predicated region
    $region6: #{tpu_custom_call.1} parent=1 // pred_check
      _
    $region7: #{tpu_custom_call.1} parent=1 // pred_check_branch
      %28 = sbr.rel (0) target = $region9
    $region8: #{tpu_custom_call.1} parent=1 // pred_region
      %30 = vsyncadd [#allocation6], 0
      %s31 = sshll.u32 %s1, 4
      %s32 = int_to_ptr.hbm [resolvable:$true] %s31
      %s33 = sshll.u32 [#allocation5], 4
      %s34 = int_to_ptr.vmem [resolvable:$true] %s33
      %39 = dma.hbm_to_vmem [thread:$0]  %s32, 256, %s34, [#allocation6], 128, 128, 8
    $region9: #{tpu_custom_call.1} parent=1 // pred_fallthru
      _
    // Predicated region
    $region10: #{tpu_custom_call.1} parent=1 // pred_check
      _
    $region11: #{tpu_custom_call.1} parent=1 // pred_check_branch
      %41 = sbr.rel (0) target = $region13
    $region12: #{tpu_custom_call.1} parent=1 // pred_region
      %43 = vsyncadd [#allocation6], 0
      %s44 = sshll.u32 %s2, 4
      %s45 = int_to_ptr.hbm [resolvable:$true] %s44
      %s46 = sshll.u32 [#allocation7], 4
      %s47 = int_to_ptr.vmem [resolvable:$true] %s46
      %52 = dma.hbm_to_vmem [thread:$0]  %s45, 256, %s47, [#allocation6], 128, 128, 8
    $region13: #{tpu_custom_call.1} parent=1 // pred_fallthru
      _
    // Predicated region
    $region14: #{tpu_custom_call.1} parent=1 // pred_check
      _
    $region15: #{tpu_custom_call.1} parent=1 // pred_check_branch
      %54 = sbr.rel (0) target = $region17
    $region16: #{tpu_custom_call.1} parent=1 // pred_region
      %56 = vsyncadd [#allocation9], 0
      %s57 = sshll.u32 %s3, 4
      %s58 = int_to_ptr.hbm [resolvable:$true] %s57
      %s59 = sshll.u32 [#allocation8], 4
      %s60 = int_to_ptr.vmem [resolvable:$true] %s59
      %65 = dma.hbm_to_vmem [thread:$0]  %s58, 2048, %s60, [#allocation9], 128, 128, 8
    $region17: #{tpu_custom_call.1} parent=1 // pred_fallthru
      _
    // Predicated region
    $region18: #{tpu_custom_call.1} parent=1 // pred_check
      _
    $region19: #{tpu_custom_call.1} parent=1 // pred_check_branch
      %67 = sbr.rel (0) target = $region21
    $region20: #{tpu_custom_call.1} parent=1 // pred_region
      _
    $region21: #{tpu_custom_call.1} parent=1 // pred_fallthru
      _
    // Predicated region
    $region22: #{tpu_custom_call.1} parent=1 // pred_check
      _
    $region23: #{tpu_custom_call.1} parent=1 // pred_check_branch
      %69 = sbr.rel (0) target = $region25
    $region24: #{tpu_custom_call.1} parent=1 // pred_region
      %71 = vsyncadd [#allocation9], 0
      %s72 = sshll.u32 %s5, 4
      %s73 = int_to_ptr.hbm [resolvable:$true] %s72
      %s74 = sshll.u32 [#allocation10], 4
      %s75 = int_to_ptr.vmem [resolvable:$true] %s74
      %80 = dma.hbm_to_vmem [thread:$0]  %s73, 2048, %s75, [#allocation9], 64, 64, 4
    $region25: #{tpu_custom_call.1} parent=1 // pred_fallthru
      _
    // Predicated region
    $region26: #{tpu_custom_call.1} parent=1 // pred_check
      _
    $region27: #{tpu_custom_call.1} parent=1 // pred_check_branch
      %82 = sbr.rel (0) target = $region29
    $region28: #{tpu_custom_call.1} parent=1 // pred_region
      _
    $region29: #{tpu_custom_call.1} parent=1 // pred_fallthru
      _
    // Predicated region
    $region30: #{tpu_custom_call.1} parent=1 // pred_check
      _
    $region31: #{tpu_custom_call.1} parent=1 // pred_check_branch
      %84 = sbr.rel (0) target = $region33
    $region32: #{tpu_custom_call.1} parent=1 // pred_region
      %86 = dma.done [#allocation3], 32
    $region33: #{tpu_custom_call.1} parent=1 // pred_fallthru
      _
    // Predicated region
    $region34: #{tpu_custom_call.1} parent=1 // pred_check
      _
    $region35: #{tpu_custom_call.1} parent=1 // pred_check_branch
      %88 = sbr.rel (0) target = $region37
    $region36: #{tpu_custom_call.1} parent=1 // pred_region
      %90 = dma.done [#allocation6], 256
    $region37: #{tpu_custom_call.1} parent=1 // pred_fallthru
      _
    // Predicated region
    $region38: #{tpu_custom_call.1} parent=1 // pred_check
      _
    $region39: #{tpu_custom_call.1} parent=1 // pred_check_branch
      %92 = sbr.rel (0) target = $region41
    $region40: #{tpu_custom_call.1} parent=1 // pred_region
      %94 = dma.done [#allocation6], 256
    $region41: #{tpu_custom_call.1} parent=1 // pred_fallthru
      _
    // Predicated region
    $region42: #{tpu_custom_call.1} parent=1 // pred_check
      _
    $region43: #{tpu_custom_call.1} parent=1 // pred_check_branch
      %96 = sbr.rel (0) target = $region45
    $region44: #{tpu_custom_call.1} parent=1 // pred_region
      %98 = dma.done [#allocation9], 2048
    $region45: #{tpu_custom_call.1} parent=1 // pred_fallthru
      _
    // Predicated region
    $region46: #{tpu_custom_call.1} parent=1 // pred_check
      _
    $region47: #{tpu_custom_call.1} parent=1 // pred_check_branch
      %100 = sbr.rel (0) target = $region49
    $region48: #{tpu_custom_call.1} parent=1 // pred_region
      %102 = dma.done [#allocation9], 2048
    $region49: #{tpu_custom_call.1} parent=1 // pred_fallthru
      _
    %v103 = vld [vmem:[#allocation5] sm:$0xff]
    %v104 = vld [vmem:[#allocation5 + $0x8] sm:$0xff]
    %v105 = vunpack.c.l.bf16 %v103
    %v106 = vunpack.c.h.bf16 %v103
    %v107 = vunpack.c.l.bf16 %v104
    %v108 = vunpack.c.h.bf16 %v104
    %v109 = vmul.f32 %v105, %v105
    %v110 = vmul.f32 %v106, %v106
    %v111 = vmul.f32 %v107, %v107
    %v112 = vmul.f32 %v108, %v108
    %v113 = vadd.f32 %v109, %v110
    %114 = vadd.xlane.f32.xlu0 %v113
    %v115 = vpop.xlane.xlu0 %114
    %v116 = vadd.f32 %v111, %v112
    %117 = vadd.xlane.f32.xlu0 %v116
    %v118 = vpop.xlane.xlu0 %117
    %vm119 = vcmp.eq.f32.partialorder %v115, 0.0
    %vm120 = vcmp.eq.f32.partialorder %v118, 0.0
    %v121 = vrsqrt.pop %v115
    %v122 = vmul.f32 %v121, %v115
    %v123 = vmul.f32 %v122, %v121
    %v124 = vmul.f32 0.5, %v123
    %v125 = vsub.f32 1.5, %v124
    %v126 = vmul.f32 %v121, %v125
    %v127 = vmul.f32 %v115, %v126
    %vm128 = vcmp.eq.f32.partialorder %v115, inf
    %v129 = vsel %vm128, %v115, %v127
    %vm130 = vcmp.eq.f32.partialorder %v115, 0.0
    %v131 = vand.u32 %v115, 2147483648
    %v132 = vsel %vm130, %v131, %v129
    %v133 = vrsqrt.pop %v118
    %v134 = vmul.f32 %v133, %v118
    %v135 = vmul.f32 %v134, %v133
    %v136 = vmul.f32 0.5, %v135
    %v137 = vsub.f32 1.5, %v136
    %v138 = vmul.f32 %v133, %v137
    %v139 = vmul.f32 %v118, %v138
    %vm140 = vcmp.eq.f32.partialorder %v118, inf
    %v141 = vsel %vm140, %v118, %v139
    %vm142 = vcmp.eq.f32.partialorder %v118, 0.0
    %v143 = vand.u32 %v118, 2147483648
    %v144 = vsel %vm142, %v143, %v141
    %v145 = vrsqrt.pop %v132
    %v146 = vmul.f32 %v145, %v132
    %v147 = vmul.f32 %v146, %v145
    %v148 = vmul.f32 0.5, %v147
    %v149 = vsub.f32 1.5, %v148
    %v150 = vmul.f32 %v145, %v149
    %vm151 = vweird.f32 %v132
    %vm152 = vweird.f32 %v145
    %vm153 = vmor %vm151, %vm152
    %v154 = vsel %vm153, %v145, %v150
    %v155 = vrsqrt.pop %v144
    %v156 = vmul.f32 %v155, %v144
    %v157 = vmul.f32 %v156, %v155
    %v158 = vmul.f32 0.5, %v157
    %v159 = vsub.f32 1.5, %v158
    %v160 = vmul.f32 %v155, %v159
    %vm161 = vweird.f32 %v144
    %vm162 = vweird.f32 %v155
    %vm163 = vmor %vm161, %vm162
    %v164 = vsel %vm163, %v155, %v160
    %v165 = vsel %vm119, 0.0, %v154
    %v166 = vsel %vm120, 0.0, %v164
    %v167 = vmul.f32 %v105, %v165
    %v168 = vmul.f32 %v106, %v165
    %v169 = vmul.f32 %v107, %v166
    %v170 = vmul.f32 %v108, %v166
    %v171 = vld [vmem:[#allocation2] sm:$0x3]
    %v173 = vperm.slane %v171, 0
    %v174 = vperm.slane %v171, 1
    %v177 = vmul.f32 %v167, %v173
    %v178 = vmul.f32 %v168, %v174
    %v179 = vmul.f32 %v169, %v173
    %v180 = vmul.f32 %v170, %v174
    %v181 = vpack.c.bf16 %v179, %v177
    %v182 = vpack.c.bf16 %v180, %v178
    %v183 = vld [vmem:[#allocation8] sm:$0xff]
    %v184 = vld [vmem:[#allocation8 + $0x8] sm:$0xff]
    %v185 = vld [vmem:[#allocation8 + $0x10] sm:$0xff]
    %v186 = vld [vmem:[#allocation8 + $0x18] sm:$0xff]
    %v187 = vld [vmem:[#allocation8 + $0x20] sm:$0xff]
    %v188 = vld [vmem:[#allocation8 + $0x28] sm:$0xff]
    %v189 = vld [vmem:[#allocation8 + $0x30] sm:$0xff]
    %v190 = vld [vmem:[#allocation8 + $0x38] sm:$0xff]
    %v191 = vld [vmem:[#allocation8 + $0x40] sm:$0xff]
    %v192 = vld [vmem:[#allocation8 + $0x48] sm:$0xff]
    %v193 = vld [vmem:[#allocation8 + $0x50] sm:$0xff]
    %v194 = vld [vmem:[#allocation8 + $0x58] sm:$0xff]
    %v195 = vld [vmem:[#allocation8 + $0x60] sm:$0xff]
    %v196 = vld [vmem:[#allocation8 + $0x68] sm:$0xff]
    %v197 = vld [vmem:[#allocation8 + $0x70] sm:$0xff]
    %v198 = vld [vmem:[#allocation8 + $0x78] sm:$0xff]
    %v199 = vld [vmem:[%s4] sm:$0x1]
    %v201 = vperm.slane %v199, 0
    %v219 = vunpack.c.l.b16 %v183
    %v220 = vunpack.c.h.b16 %v183
    %v221 = vunpack.c.l.b16 %v184
    %v222 = vunpack.c.h.b16 %v184
    %v223 = vunpack.c.l.b16 %v185
    %v224 = vunpack.c.h.b16 %v185
    %v225 = vunpack.c.l.b16 %v186
    %v226 = vunpack.c.h.b16 %v186
    %v227 = vunpack.c.l.b16 %v187
    %v228 = vunpack.c.h.b16 %v187
    %v229 = vunpack.c.l.b16 %v188
    %v230 = vunpack.c.h.b16 %v188
    %v231 = vunpack.c.l.b16 %v189
    %v232 = vunpack.c.h.b16 %v189
    %v233 = vunpack.c.l.b16 %v190
    %v234 = vunpack.c.h.b16 %v190
    %v235 = vunpack.c.l.b16 %v191
    %v236 = vunpack.c.h.b16 %v191
    %v237 = vunpack.c.l.b16 %v192
    %v238 = vunpack.c.h.b16 %v192
    %v239 = vunpack.c.l.b16 %v193
    %v240 = vunpack.c.h.b16 %v193
    %v241 = vunpack.c.l.b16 %v194
    %v242 = vunpack.c.h.b16 %v194
    %v243 = vunpack.c.l.b16 %v195
    %v244 = vunpack.c.h.b16 %v195
    %v245 = vunpack.c.l.b16 %v196
    %v246 = vunpack.c.h.b16 %v196
    %v247 = vunpack.c.l.b16 %v197
    %v248 = vunpack.c.h.b16 %v197
    %v249 = vunpack.c.l.b16 %v198
    %v250 = vunpack.c.h.b16 %v198
    %v251 = vpack.c.b16 %v221, %v219
    %v252 = vpack.c.b16 %v222, %v220
    %v253 = vpack.c.b16 %v225, %v223
    %v254 = vpack.c.b16 %v226, %v224
    %v255 = vpack.c.b16 %v229, %v227
    %v256 = vpack.c.b16 %v230, %v228
    %v257 = vpack.c.b16 %v233, %v231
    %v258 = vpack.c.b16 %v234, %v232
    %v259 = vpack.c.b16 %v237, %v235
    %v260 = vpack.c.b16 %v238, %v236
    %v261 = vpack.c.b16 %v241, %v239
    %v262 = vpack.c.b16 %v242, %v240
    %v263 = vpack.c.b16 %v245, %v243
    %v264 = vpack.c.b16 %v246, %v244
    %v265 = vpack.c.b16 %v249, %v247
    %v266 = vpack.c.b16 %v250, %v248
    %283 = vmatpush.bf16.xpose.msra.mxu0 %v265
    %284 = vmatpush.bf16.xpose.msra.mxu0 %v263
    %285 = vmatpush.bf16.xpose.msra.mxu0 %v261
    %286 = vmatpush.bf16.xpose.msra.mxu0 %v259
    %287 = vmatpush.bf16.xpose.msra.mxu0 %v257
    %288 = vmatpush.bf16.xpose.msra.mxu0 %v255
    %289 = vmatpush.bf16.xpose.msra.mxu0 %v253
    %290 = vmatpush.bf16.xpose.msra.mxu0 %v251
    %291 = vmatmul.bf16.gmra.mxu0 %v181
    %v292 = vpop.f32.mrf.mxu0
    %v293 = vadd.f32 %v201, %v292
    %v294 = vpop.f32.mrf.mxu0
    %v295 = vadd.f32 %v201, %v294
    %296 = vdwg.mxu0
    %297 = vmatpush.bf16.xpose.msra.mxu0 %v266
    %298 = vmatpush.bf16.xpose.msra.mxu0 %v264
    %299 = vmatpush.bf16.xpose.msra.mxu0 %v262
    %300 = vmatpush.bf16.xpose.msra.mxu0 %v260
    %301 = vmatpush.bf16.xpose.msra.mxu0 %v258
    %302 = vmatpush.bf16.xpose.msra.mxu0 %v256
    %303 = vmatpush.bf16.xpose.msra.mxu0 %v254
    %304 = vmatpush.bf16.xpose.msra.mxu0 %v252
    %305 = vmatmul.bf16.gmra.mxu0 %v182
    %v306 = vpop.f32.mrf.mxu0
    %v307 = vadd.f32 %v293, %v306
    %v308 = vpop.f32.mrf.mxu0
    %v309 = vadd.f32 %v295, %v308
    %310 = vdwg.mxu0
    %v311 = vld [vmem:[#allocation7] sm:$0xff]
    %v312 = vld [vmem:[#allocation7 + $0x8] sm:$0xff]
    %v313 = vadd.f32 %v307, %v311
    %v314 = vadd.f32 %v309, %v312
    %v315 = vtanh.pop %v313
    %v316 = vtanh.pop %v314
    %v317 = vpack.c.bf16 %v316, %v315
    %v318 = vld [vmem:[#allocation10] sm:$0xf]
    %v319 = vld [vmem:[#allocation10 + $0x4] sm:$0xf]
    %v320 = vld [vmem:[#allocation10 + $0x8] sm:$0xf]
    %v321 = vld [vmem:[#allocation10 + $0xc] sm:$0xf]
    %v322 = vld [vmem:[#allocation10 + $0x10] sm:$0xf]
    %v323 = vld [vmem:[#allocation10 + $0x14] sm:$0xf]
    %v324 = vld [vmem:[#allocation10 + $0x18] sm:$0xf]
    %v325 = vld [vmem:[#allocation10 + $0x1c] sm:$0xf]
    %v326 = vld [vmem:[#allocation10 + $0x20] sm:$0xf]
    %v327 = vld [vmem:[#allocation10 + $0x24] sm:$0xf]
    %v328 = vld [vmem:[#allocation10 + $0x28] sm:$0xf]
    %v329 = vld [vmem:[#allocation10 + $0x2c] sm:$0xf]
    %v330 = vld [vmem:[#allocation10 + $0x30] sm:$0xf]
    %v331 = vld [vmem:[#allocation10 + $0x34] sm:$0xf]
    %v332 = vld [vmem:[#allocation10 + $0x38] sm:$0xf]
    %v333 = vld [vmem:[#allocation10 + $0x3c] sm:$0xf]
    %v334 = vld [vmem:[#allocation10 + $0x40] sm:$0xf]
    %v335 = vld [vmem:[#allocation10 + $0x44] sm:$0xf]
    %v336 = vld [vmem:[#allocation10 + $0x48] sm:$0xf]
    %v337 = vld [vmem:[#allocation10 + $0x4c] sm:$0xf]
    %v338 = vld [vmem:[#allocation10 + $0x50] sm:$0xf]
    %v339 = vld [vmem:[#allocation10 + $0x54] sm:$0xf]
    %v340 = vld [vmem:[#allocation10 + $0x58] sm:$0xf]
    %v341 = vld [vmem:[#allocation10 + $0x5c] sm:$0xf]
    %v342 = vld [vmem:[#allocation10 + $0x60] sm:$0xf]
    %v343 = vld [vmem:[#allocation10 + $0x64] sm:$0xf]
    %v344 = vld [vmem:[#allocation10 + $0x68] sm:$0xf]
    %v345 = vld [vmem:[#allocation10 + $0x6c] sm:$0xf]
    %v346 = vld [vmem:[#allocation10 + $0x70] sm:$0xf]
    %v347 = vld [vmem:[#allocation10 + $0x74] sm:$0xf]
    %v348 = vld [vmem:[#allocation10 + $0x78] sm:$0xf]
    %v349 = vld [vmem:[#allocation10 + $0x7c] sm:$0xf]
    %v350 = vld [vmem:[%s6] sm:$0x3]
    %v352 = vperm.slane %v350, 0
    %v353 = vperm.slane %v350, 1
    %v388 = vunpack.c.l.b16 %v318
    %v389 = vunpack.c.l.b16 %v319
    %v390 = vunpack.c.l.b16 %v320
    %v391 = vunpack.c.l.b16 %v321
    %v392 = vunpack.c.l.b16 %v322
    %v393 = vunpack.c.l.b16 %v323
    %v394 = vunpack.c.l.b16 %v324
    %v395 = vunpack.c.l.b16 %v325
    %v396 = vunpack.c.l.b16 %v326
    %v397 = vunpack.c.l.b16 %v327
    %v398 = vunpack.c.l.b16 %v328
    %v399 = vunpack.c.l.b16 %v329
    %v400 = vunpack.c.l.b16 %v330
    %v401 = vunpack.c.l.b16 %v331
    %v402 = vunpack.c.l.b16 %v332
    %v403 = vunpack.c.l.b16 %v333
    %v404 = vunpack.c.l.b16 %v334
    %v405 = vunpack.c.l.b16 %v335
    %v406 = vunpack.c.l.b16 %v336
    %v407 = vunpack.c.l.b16 %v337
    %v408 = vunpack.c.l.b16 %v338
    %v409 = vunpack.c.l.b16 %v339
    %v410 = vunpack.c.l.b16 %v340
    %v411 = vunpack.c.l.b16 %v341
    %v412 = vunpack.c.l.b16 %v342
    %v413 = vunpack.c.l.b16 %v343
    %v414 = vunpack.c.l.b16 %v344
    %v415 = vunpack.c.l.b16 %v345
    %v416 = vunpack.c.l.b16 %v346
    %v417 = vunpack.c.l.b16 %v347
    %v418 = vunpack.c.l.b16 %v348
    %v419 = vunpack.c.l.b16 %v349
    %v420 = vpack.c.b16 %v389, %v388
    %v421 = vpack.c.b16 %v391, %v390
    %v422 = vpack.c.b16 %v393, %v392
    %v423 = vpack.c.b16 %v395, %v394
    %v424 = vpack.c.b16 %v397, %v396
    %v425 = vpack.c.b16 %v399, %v398
    %v426 = vpack.c.b16 %v401, %v400
    %v427 = vpack.c.b16 %v403, %v402
    %v428 = vpack.c.b16 %v405, %v404
    %v429 = vpack.c.b16 %v407, %v406
    %v430 = vpack.c.b16 %v409, %v408
    %v431 = vpack.c.b16 %v411, %v410
    %v432 = vpack.c.b16 %v413, %v412
    %v433 = vpack.c.b16 %v415, %v414
    %v434 = vpack.c.b16 %v417, %v416
    %v435 = vpack.c.b16 %v419, %v418
    %452 = vmatpush.bf16.xpose.msra.mxu0 %v427
    %453 = vmatpush.bf16.xpose.msra.mxu0 %v426
    %454 = vmatpush.bf16.xpose.msra.mxu0 %v425
    %455 = vmatpush.bf16.xpose.msra.mxu0 %v424
    %456 = vmatpush.bf16.xpose.msra.mxu0 %v423
    %457 = vmatpush.bf16.xpose.msra.mxu0 %v422
    %458 = vmatpush.bf16.xpose.msra.mxu0 %v421
    %459 = vmatpush.bf16.xpose.msra.mxu0 %v420
    %460 = vmatmul.bf16.gmra.mxu0 %v317
    %v461 = vpop.f32.mrf.mxu0
    %v462 = vadd.f32 %v352, %v461
    %v463 = vpop.f32.mrf.mxu0
    %v464 = vadd.f32 %v352, %v463
    %465 = vdwg.mxu0
    %466 = vmatpush.bf16.xpose.msra.mxu0 %v435
    %467 = vmatpush.bf16.xpose.msra.mxu0 %v434
    %468 = vmatpush.bf16.xpose.msra.mxu0 %v433
    %469 = vmatpush.bf16.xpose.msra.mxu0 %v432
    %470 = vmatpush.bf16.xpose.msra.mxu0 %v431
    %471 = vmatpush.bf16.xpose.msra.mxu0 %v430
    %472 = vmatpush.bf16.xpose.msra.mxu0 %v429
    %473 = vmatpush.bf16.xpose.msra.mxu0 %v428
    %474 = vmatmul.bf16.gmra.mxu0 %v317
    %v475 = vpop.f32.mrf.mxu0
    %v476 = vadd.f32 %v353, %v475
    %v477 = vpop.f32.mrf.mxu0
    %v478 = vadd.f32 %v353, %v477
    %479 = vdwg.mxu0
    %v480 = vmul.f32 %v462, 0.5
    %v481 = vmul.f32 %v476, 0.5
    %v482 = vmul.f32 %v464, 0.5
    %v483 = vmul.f32 %v478, 0.5
    %v484 = vtanh.pop %v480
    %v485 = vtanh.pop %v481
    %v486 = vtanh.pop %v482
    %v487 = vtanh.pop %v483
    %v488 = vadd.f32 %v484, 1.0
    %v489 = vadd.f32 %v485, 1.0
    %v490 = vadd.f32 %v486, 1.0
    %v491 = vadd.f32 %v487, 1.0
    %v492 = vmul.f32 %v488, 0.5
    %v493 = vmul.f32 %v489, 0.5
    %v494 = vmul.f32 %v490, 0.5
    %v495 = vmul.f32 %v491, 0.5
    %496 = vst [vmem:[#allocation11] sm:$0xff] %v492
    %497 = vst [vmem:[#allocation11 + $0x8] sm:$0xff] %v493
    %498 = vst [vmem:[#allocation11 + $0x10] sm:$0xff] %v494
    %499 = vst [vmem:[#allocation11 + $0x18] sm:$0xff] %v495
    // Predicated region
    $region50: #{tpu_custom_call.1} parent=1 // pred_check
      _
    $region51: #{tpu_custom_call.1} parent=1 // pred_check_branch
      %501 = sbr.rel (0) target = $region53
    $region52: #{tpu_custom_call.1} parent=1 // pred_region
      %503 = vsyncadd [#allocation4], 0
      %s504 = sshll.u32 [#allocation11], 4
      %s505 = int_to_ptr.vmem [resolvable:$true] %s504
      %s506 = sshll.u32 %s7, 4
      %s507 = int_to_ptr.hbm [resolvable:$true] %s506
      %512 = dma.vmem_to_hbm [thread:$0]  %s505, 512, %s507, [#allocation4], 256, 256, 16
    $region53: #{tpu_custom_call.1} parent=1 // pred_fallthru
      _
    // Predicated region
    $region54: #{tpu_custom_call.1} parent=1 // pred_check
      _
    $region55: #{tpu_custom_call.1} parent=1 // pred_check_branch
      %514 = sbr.rel (0) target = $region57
    $region56: #{tpu_custom_call.1} parent=1 // pred_region
      %516 = dma.done [#allocation4], 512
    $region57: #{tpu_custom_call.1} parent=1 // pred_fallthru
      _
    %517 = vsyncpa [#allocation3], 1
    %518 = vsyncpa [#allocation6], 1
    %519 = vsyncpa [#allocation9], 1
    %520 = vsyncpa [#allocation4], 1

// kernel: tpu_custom_call.1
$region0: #{tpu_custom_call.1}
  #allocation0 [shape = 'u32[]', space=smem, size = 0x4, offset = 0x4, fixed_abs, tag = 'smem constant byte address 0x4 - core index']
  #allocation1 [shape = 'u32[72,128]{1,0:T(1,128)}', space=vmem, size = 0x9000, scoped, tag = 'internal scratch']
  %s0 = inlined_call_operand.hbm [shape: f32[1,256], index: 0, kind: input, shape index: {}]
  %s1 = inlined_call_operand.hbm [shape: bf16[16,256], index: 1, kind: input, shape index: {}]
  %s2 = inlined_call_operand.hbm [shape: f32[16,128], index: 2, kind: input, shape index: {}]
  %s3 = inlined_call_operand.hbm [shape: bf16[128,256], index: 3, kind: input, shape index: {}]
  %s4 = inlined_call_operand.vmem [shape: f32[1,128], index: 4, kind: input, shape index: {}]
  %s5 = inlined_call_operand.hbm [shape: bf16[256,128], index: 5, kind: input, shape index: {}]
  %s6 = inlined_call_operand.vmem [shape: f32[1,256], index: 6, kind: input, shape index: {}]
  %s7 = inlined_call_operand.hbm [shape: f32[16,256], index: 7, kind: output, shape index: {}]
  %s8 = sld [smem:[#allocation0]]
  $region58: #{tpu_custom_call.1} parent=0
    _
  %s10 = ssub.s32 1, %s8
  %s11 = scalar_select 0, %s10, %s8
  $region1: #{tpu_custom_call.1} parent=0
    #allocation2 [shape = 'u8[1024]{0}', space=vmem, size = 0x400, scoped, tag = 'input window, operand 0, single buffered']
    #allocation3 [shape = 's32[1]{0}', space=sflag, size = 0x4, scoped, tag = 'scoped memory for tpu_custom_call.1']
    #allocation4 [shape = 's32[1]{0}', space=sflag, size = 0x4, scoped, tag = 'scoped memory for tpu_custom_call.1']
    #allocation5 [shape = 'u8[8192]{0}', space=vmem, size = 0x2000, scoped, tag = 'input window, operand 1, single buffered']
    #allocation6 [shape = 's32[1]{0}', space=sflag, size = 0x4, scoped, tag = 'scoped memory for tpu_custom_call.1']
    #allocation7 [shape = 'u8[8192]{0}', space=vmem, size = 0x2000, scoped, tag = 'input window, operand 2, single buffered']
    #allocation8 [shape = 'u8[65536]{0}', space=vmem, size = 0x10000, scoped, tag = 'input window, operand 3, single buffered']
    #allocation9 [shape = 's32[1]{0}', space=sflag, size = 0x4, scoped, tag = 'scoped memory for tpu_custom_call.1']
    #allocation10 [shape = 'u8[65536]{0}', space=vmem, size = 0x10000, scoped, tag = 'input window, operand 5, single buffered']
    #allocation11 [shape = 'u8[16384]{0}', space=vmem, size = 0x4000, scoped, tag = 'output window, operand 0, single buffered']
    %12 = vsyncpa [#allocation3], 0
    %13 = vsyncpa [#allocation6], 0
    %14 = vsyncpa [#allocation9], 0
    %15 = vsyncpa [#allocation4], 0
    // Predicated region
    $region2: #{tpu_custom_call.1} parent=1 // pred_check
      _
    $region3: #{tpu_custom_call.1} parent=1 // pred_check_branch
      %17 = sbr.rel (0) target = $region5
    $region4: #{tpu_custom_call.1} parent=1 // pred_region
      %19 = vsyncadd [#allocation3], 0
      %s21 = sshll.u32 %s0, 4
      %s22 = int_to_ptr.hbm [resolvable:$true] %s21
      %s23 = sshll.u32 [#allocation2], 4
      %s24 = int_to_ptr.vmem [resolvable:$true] %s23
      %26 = dma.hbm_to_vmem [thread:$0]  %s22, 32, %s24, [#allocation3]
    $region5: #{tpu_custom_call.1} parent=1 // pred_fallthru
      _
    // Predicated region
    $region6: #{tpu_custom_call.1} parent=1 // pred_check
      _
    $region7: #{tpu_custom_call.1} parent=1 // pred_check_branch
      %28 = sbr.rel (0) target = $region9
    $region8: #{tpu_custom_call.1} parent=1 // pred_region
      %30 = vsyncadd [#allocation6], 0
      %s31 = sshll.u32 %s1, 4
      %s32 = int_to_ptr.hbm [resolvable:$true] %s31
      %s33 = sshll.u32 [#allocation5], 4
      %s34 = int_to_ptr.vmem [resolvable:$true] %s33
      %39 = dma.hbm_to_vmem [thread:$0]  %s32, 256, %s34, [#allocation6], 128, 128, 8
    $region9: #{tpu_custom_call.1} parent=1 // pred_fallthru
      _
    // Predicated region
    $region10: #{tpu_custom_call.1} parent=1 // pred_check
      _
    $region11: #{tpu_custom_call.1} parent=1 // pred_check_branch
      %41 = sbr.rel (0) target = $region13
    $region12: #{tpu_custom_call.1} parent=1 // pred_region
      %43 = vsyncadd [#allocation6], 0
      %s44 = sshll.u32 %s2, 4
      %s45 = int_to_ptr.hbm [resolvable:$true] %s44
      %s46 = sshll.u32 [#allocation7], 4
      %s47 = int_to_ptr.vmem [resolvable:$true] %s46
      %52 = dma.hbm_to_vmem [thread:$0]  %s45, 256, %s47, [#allocation6], 128, 128, 8
    $region13: #{tpu_custom_call.1} parent=1 // pred_fallthru
      _
    // Predicated region
    $region14: #{tpu_custom_call.1} parent=1 // pred_check
      _
    $region15: #{tpu_custom_call.1} parent=1 // pred_check_branch
      %54 = sbr.rel (0) target = $region17
    $region16: #{tpu_custom_call.1} parent=1 // pred_region
      %56 = vsyncadd [#allocation9], 0
      %s57 = sshll.u32 %s3, 4
      %s58 = int_to_ptr.hbm [resolvable:$true] %s57
      %s59 = sshll.u32 [#allocation8], 4
      %s60 = int_to_ptr.vmem [resolvable:$true] %s59
      %65 = dma.hbm_to_vmem [thread:$0]  %s58, 2048, %s60, [#allocation9], 128, 128, 8
    $region17: #{tpu_custom_call.1} parent=1 // pred_fallthru
      _
    // Predicated region
    $region18: #{tpu_custom_call.1} parent=1 // pred_check
      _
    $region19: #{tpu_custom_call.1} parent=1 // pred_check_branch
      %67 = sbr.rel (0) target = $region21
    $region20: #{tpu_custom_call.1} parent=1 // pred_region
      _
    $region21: #{tpu_custom_call.1} parent=1 // pred_fallthru
      _
    // Predicated region
    $region22: #{tpu_custom_call.1} parent=1 // pred_check
      _
    $region23: #{tpu_custom_call.1} parent=1 // pred_check_branch
      %69 = sbr.rel (0) target = $region25
    $region24: #{tpu_custom_call.1} parent=1 // pred_region
      %71 = vsyncadd [#allocation9], 0
      %s72 = sshll.u32 %s5, 4
      %s73 = int_to_ptr.hbm [resolvable:$true] %s72
      %s74 = sshll.u32 [#allocation10], 4
      %s75 = int_to_ptr.vmem [resolvable:$true] %s74
      %80 = dma.hbm_to_vmem [thread:$0]  %s73, 2048, %s75, [#allocation9], 64, 64, 4
    $region25: #{tpu_custom_call.1} parent=1 // pred_fallthru
      _
    // Predicated region
    $region26: #{tpu_custom_call.1} parent=1 // pred_check
      _
    $region27: #{tpu_custom_call.1} parent=1 // pred_check_branch
      %82 = sbr.rel (0) target = $region29
    $region28: #{tpu_custom_call.1} parent=1 // pred_region
      _
    $region29: #{tpu_custom_call.1} parent=1 // pred_fallthru
      _
    // Predicated region
    $region30: #{tpu_custom_call.1} parent=1 // pred_check
      _
    $region31: #{tpu_custom_call.1} parent=1 // pred_check_branch
      %84 = sbr.rel (0) target = $region33
    $region32: #{tpu_custom_call.1} parent=1 // pred_region
      %86 = dma.done [#allocation3], 32
    $region33: #{tpu_custom_call.1} parent=1 // pred_fallthru
      _
    // Predicated region
    $region34: #{tpu_custom_call.1} parent=1 // pred_check
      _
    $region35: #{tpu_custom_call.1} parent=1 // pred_check_branch
      %88 = sbr.rel (0) target = $region37
    $region36: #{tpu_custom_call.1} parent=1 // pred_region
      %90 = dma.done [#allocation6], 256
    $region37: #{tpu_custom_call.1} parent=1 // pred_fallthru
      _
    // Predicated region
    $region38: #{tpu_custom_call.1} parent=1 // pred_check
      _
    $region39: #{tpu_custom_call.1} parent=1 // pred_check_branch
      %92 = sbr.rel (0) target = $region41
    $region40: #{tpu_custom_call.1} parent=1 // pred_region
      %94 = dma.done [#allocation6], 256
    $region41: #{tpu_custom_call.1} parent=1 // pred_fallthru
      _
    // Predicated region
    $region42: #{tpu_custom_call.1} parent=1 // pred_check
      _
    $region43: #{tpu_custom_call.1} parent=1 // pred_check_branch
      %96 = sbr.rel (0) target = $region45
    $region44: #{tpu_custom_call.1} parent=1 // pred_region
      %98 = dma.done [#allocation9], 2048
    $region45: #{tpu_custom_call.1} parent=1 // pred_fallthru
      _
    // Predicated region
    $region46: #{tpu_custom_call.1} parent=1 // pred_check
      _
    $region47: #{tpu_custom_call.1} parent=1 // pred_check_branch
      %100 = sbr.rel (0) target = $region49
    $region48: #{tpu_custom_call.1} parent=1 // pred_region
      %102 = dma.done [#allocation9], 2048
    $region49: #{tpu_custom_call.1} parent=1 // pred_fallthru
      _
    %v103 = vld [vmem:[#allocation5] sm:$0xff]
    %v104 = vld [vmem:[#allocation5 + $0x8] sm:$0xff]
    %v105 = vunpack.c.l.bf16 %v103
    %v106 = vunpack.c.h.bf16 %v103
    %v107 = vunpack.c.l.bf16 %v104
    %v108 = vunpack.c.h.bf16 %v104
    %v109 = vmul.f32 %v105, %v105
    %v110 = vmul.f32 %v106, %v106
    %v111 = vmul.f32 %v107, %v107
    %v112 = vmul.f32 %v108, %v108
    %v113 = vadd.f32 %v109, %v110
    %114 = vadd.xlane.f32.xlu0 %v113
    %v115 = vpop.xlane.xlu0 %114
    %v116 = vadd.f32 %v111, %v112
    %117 = vadd.xlane.f32.xlu0 %v116
    %v118 = vpop.xlane.xlu0 %117
    %vm119 = vcmp.eq.f32.partialorder %v115, 0.0
    %vm120 = vcmp.eq.f32.partialorder %v118, 0.0
    %v121 = vrsqrt.pop %v115
    %v122 = vmul.f32 %v121, %v115
    %v123 = vmul.f32 %v122, %v121
    %v124 = vmul.f32 0.5, %v123
    %v125 = vsub.f32 1.5, %v124
    %v126 = vmul.f32 %v121, %v125
    %v127 = vmul.f32 %v115, %v126
    %vm128 = vcmp.eq.f32.partialorder %v115, inf
    %v129 = vsel %vm128, %v115, %v127
    %vm130 = vcmp.eq.f32.partialorder %v115, 0.0
    %v131 = vand.u32 %v115, 2147483648
    %v132 = vsel %vm130, %v131, %v129
    %v133 = vrsqrt.pop %v118
    %v134 = vmul.f32 %v133, %v118
    %v135 = vmul.f32 %v134, %v133
    %v136 = vmul.f32 0.5, %v135
    %v137 = vsub.f32 1.5, %v136
    %v138 = vmul.f32 %v133, %v137
    %v139 = vmul.f32 %v118, %v138
    %vm140 = vcmp.eq.f32.partialorder %v118, inf
    %v141 = vsel %vm140, %v118, %v139
    %vm142 = vcmp.eq.f32.partialorder %v118, 0.0
    %v143 = vand.u32 %v118, 2147483648
    %v144 = vsel %vm142, %v143, %v141
    %v145 = vrsqrt.pop %v132
    %v146 = vmul.f32 %v145, %v132
    %v147 = vmul.f32 %v146, %v145
    %v148 = vmul.f32 0.5, %v147
    %v149 = vsub.f32 1.5, %v148
    %v150 = vmul.f32 %v145, %v149
    %vm151 = vweird.f32 %v132
    %vm152 = vweird.f32 %v145
    %vm153 = vmor %vm151, %vm152
    %v154 = vsel %vm153, %v145, %v150
    %v155 = vrsqrt.pop %v144
    %v156 = vmul.f32 %v155, %v144
    %v157 = vmul.f32 %v156, %v155
    %v158 = vmul.f32 0.5, %v157
    %v159 = vsub.f32 1.5, %v158
    %v160 = vmul.f32 %v155, %v159
    %vm161 = vweird.f32 %v144
    %vm162 = vweird.f32 %v155
    %vm163 = vmor %vm161, %vm162
    %v164 = vsel %vm163, %v155, %v160
    %v165 = vsel %vm119, 0.0, %v154
    %v166 = vsel %vm120, 0.0, %v164
    %v167 = vmul.f32 %v105, %v165
    %v168 = vmul.f32 %v106, %v165
    %v169 = vmul.f32 %v107, %v166
    %v170 = vmul.f32 %v108, %v166
    %v171 = vld [vmem:[#allocation2] sm:$0x3]
    %v173 = vperm.slane %v171, 0
    %v174 = vperm.slane %v171, 1
    %v177 = vmul.f32 %v167, %v173
    %v178 = vmul.f32 %v168, %v174
    %v179 = vmul.f32 %v169, %v173
    %v180 = vmul.f32 %v170, %v174
    %v181 = vpack.c.bf16 %v179, %v177
    %v182 = vpack.c.bf16 %v180, %v178
    %v183 = vld [vmem:[#allocation8] sm:$0xff]
    %v184 = vld [vmem:[#allocation8 + $0x8] sm:$0xff]
    %v185 = vld [vmem:[#allocation8 + $0x10] sm:$0xff]
    %v186 = vld [vmem:[#allocation8 + $0x18] sm:$0xff]
    %v187 = vld [vmem:[#allocation8 + $0x20] sm:$0xff]
    %v188 = vld [vmem:[#allocation8 + $0x28] sm:$0xff]
    %v189 = vld [vmem:[#allocation8 + $0x30] sm:$0xff]
    %v190 = vld [vmem:[#allocation8 + $0x38] sm:$0xff]
    %v191 = vld [vmem:[#allocation8 + $0x40] sm:$0xff]
    %v192 = vld [vmem:[#allocation8 + $0x48] sm:$0xff]
    %v193 = vld [vmem:[#allocation8 + $0x50] sm:$0xff]
    %v194 = vld [vmem:[#allocation8 + $0x58] sm:$0xff]
    %v195 = vld [vmem:[#allocation8 + $0x60] sm:$0xff]
    %v196 = vld [vmem:[#allocation8 + $0x68] sm:$0xff]
    %v197 = vld [vmem:[#allocation8 + $0x70] sm:$0xff]
    %v198 = vld [vmem:[#allocation8 + $0x78] sm:$0xff]
    %v199 = vld [vmem:[%s4] sm:$0x1]
    %v201 = vperm.slane %v199, 0
    %v219 = vunpack.c.l.b16 %v183
    %v220 = vunpack.c.h.b16 %v183
    %v221 = vunpack.c.l.b16 %v184
    %v222 = vunpack.c.h.b16 %v184
    %v223 = vunpack.c.l.b16 %v185
    %v224 = vunpack.c.h.b16 %v185
    %v225 = vunpack.c.l.b16 %v186
    %v226 = vunpack.c.h.b16 %v186
    %v227 = vunpack.c.l.b16 %v187
    %v228 = vunpack.c.h.b16 %v187
    %v229 = vunpack.c.l.b16 %v188
    %v230 = vunpack.c.h.b16 %v188
    %v231 = vunpack.c.l.b16 %v189
    %v232 = vunpack.c.h.b16 %v189
    %v233 = vunpack.c.l.b16 %v190
    %v234 = vunpack.c.h.b16 %v190
    %v235 = vunpack.c.l.b16 %v191
    %v236 = vunpack.c.h.b16 %v191
    %v237 = vunpack.c.l.b16 %v192
    %v238 = vunpack.c.h.b16 %v192
    %v239 = vunpack.c.l.b16 %v193
    %v240 = vunpack.c.h.b16 %v193
    %v241 = vunpack.c.l.b16 %v194
    %v242 = vunpack.c.h.b16 %v194
    %v243 = vunpack.c.l.b16 %v195
    %v244 = vunpack.c.h.b16 %v195
    %v245 = vunpack.c.l.b16 %v196
    %v246 = vunpack.c.h.b16 %v196
    %v247 = vunpack.c.l.b16 %v197
    %v248 = vunpack.c.h.b16 %v197
    %v249 = vunpack.c.l.b16 %v198
    %v250 = vunpack.c.h.b16 %v198
    %v251 = vpack.c.b16 %v221, %v219
    %v252 = vpack.c.b16 %v222, %v220
    %v253 = vpack.c.b16 %v225, %v223
    %v254 = vpack.c.b16 %v226, %v224
    %v255 = vpack.c.b16 %v229, %v227
    %v256 = vpack.c.b16 %v230, %v228
    %v257 = vpack.c.b16 %v233, %v231
    %v258 = vpack.c.b16 %v234, %v232
    %v259 = vpack.c.b16 %v237, %v235
    %v260 = vpack.c.b16 %v238, %v236
    %v261 = vpack.c.b16 %v241, %v239
    %v262 = vpack.c.b16 %v242, %v240
    %v263 = vpack.c.b16 %v245, %v243
    %v264 = vpack.c.b16 %v246, %v244
    %v265 = vpack.c.b16 %v249, %v247
    %v266 = vpack.c.b16 %v250, %v248
    %283 = vmatpush.bf16.xpose.msra.mxu0 %v265
    %284 = vmatpush.bf16.xpose.msra.mxu0 %v263
    %285 = vmatpush.bf16.xpose.msra.mxu0 %v261
    %286 = vmatpush.bf16.xpose.msra.mxu0 %v259
    %287 = vmatpush.bf16.xpose.msra.mxu0 %v257
    %288 = vmatpush.bf16.xpose.msra.mxu0 %v255
    %289 = vmatpush.bf16.xpose.msra.mxu0 %v253
    %290 = vmatpush.bf16.xpose.msra.mxu0 %v251
    %291 = vmatmul.bf16.gmra.mxu0 %v181
    %v292 = vpop.f32.mrf.mxu0
    %v293 = vadd.f32 %v201, %v292
    %v294 = vpop.f32.mrf.mxu0
    %v295 = vadd.f32 %v201, %v294
    %296 = vdwg.mxu0
    %297 = vmatpush.bf16.xpose.msra.mxu0 %v266
    %298 = vmatpush.bf16.xpose.msra.mxu0 %v264
    %299 = vmatpush.bf16.xpose.msra.mxu0 %v262
    %300 = vmatpush.bf16.xpose.msra.mxu0 %v260
    %301 = vmatpush.bf16.xpose.msra.mxu0 %v258
    %302 = vmatpush.bf16.xpose.msra.mxu0 %v256
    %303 = vmatpush.bf16.xpose.msra.mxu0 %v254
    %304 = vmatpush.bf16.xpose.msra.mxu0 %v252
    %305 = vmatmul.bf16.gmra.mxu0 %v182
    %v306 = vpop.f32.mrf.mxu0
    %v307 = vadd.f32 %v293, %v306
    %v308 = vpop.f32.mrf.mxu0
    %v309 = vadd.f32 %v295, %v308
    %310 = vdwg.mxu0
    %v311 = vld [vmem:[#allocation7] sm:$0xff]
    %v312 = vld [vmem:[#allocation7 + $0x8] sm:$0xff]
    %v313 = vadd.f32 %v307, %v311
    %v314 = vadd.f32 %v309, %v312
    %v315 = vtanh.pop %v313
    %v316 = vtanh.pop %v314
    %v317 = vpack.c.bf16 %v316, %v315
    %v318 = vld [vmem:[#allocation10] sm:$0xf]
    %v319 = vld [vmem:[#allocation10 + $0x4] sm:$0xf]
    %v320 = vld [vmem:[#allocation10 + $0x8] sm:$0xf]
    %v321 = vld [vmem:[#allocation10 + $0xc] sm:$0xf]
    %v322 = vld [vmem:[#allocation10 + $0x10] sm:$0xf]
    %v323 = vld [vmem:[#allocation10 + $0x14] sm:$0xf]
    %v324 = vld [vmem:[#allocation10 + $0x18] sm:$0xf]
    %v325 = vld [vmem:[#allocation10 + $0x1c] sm:$0xf]
    %v326 = vld [vmem:[#allocation10 + $0x20] sm:$0xf]
    %v327 = vld [vmem:[#allocation10 + $0x24] sm:$0xf]
    %v328 = vld [vmem:[#allocation10 + $0x28] sm:$0xf]
    %v329 = vld [vmem:[#allocation10 + $0x2c] sm:$0xf]
    %v330 = vld [vmem:[#allocation10 + $0x30] sm:$0xf]
    %v331 = vld [vmem:[#allocation10 + $0x34] sm:$0xf]
    %v332 = vld [vmem:[#allocation10 + $0x38] sm:$0xf]
    %v333 = vld [vmem:[#allocation10 + $0x3c] sm:$0xf]
    %v334 = vld [vmem:[#allocation10 + $0x40] sm:$0xf]
    %v335 = vld [vmem:[#allocation10 + $0x44] sm:$0xf]
    %v336 = vld [vmem:[#allocation10 + $0x48] sm:$0xf]
    %v337 = vld [vmem:[#allocation10 + $0x4c] sm:$0xf]
    %v338 = vld [vmem:[#allocation10 + $0x50] sm:$0xf]
    %v339 = vld [vmem:[#allocation10 + $0x54] sm:$0xf]
    %v340 = vld [vmem:[#allocation10 + $0x58] sm:$0xf]
    %v341 = vld [vmem:[#allocation10 + $0x5c] sm:$0xf]
    %v342 = vld [vmem:[#allocation10 + $0x60] sm:$0xf]
    %v343 = vld [vmem:[#allocation10 + $0x64] sm:$0xf]
    %v344 = vld [vmem:[#allocation10 + $0x68] sm:$0xf]
    %v345 = vld [vmem:[#allocation10 + $0x6c] sm:$0xf]
    %v346 = vld [vmem:[#allocation10 + $0x70] sm:$0xf]
    %v347 = vld [vmem:[#allocation10 + $0x74] sm:$0xf]
    %v348 = vld [vmem:[#allocation10 + $0x78] sm:$0xf]
    %v349 = vld [vmem:[#allocation10 + $0x7c] sm:$0xf]
    %v350 = vld [vmem:[%s6] sm:$0x3]
    %v352 = vperm.slane %v350, 0
    %v353 = vperm.slane %v350, 1
    %v388 = vunpack.c.l.b16 %v318
    %v389 = vunpack.c.l.b16 %v319
    %v390 = vunpack.c.l.b16 %v320
    %v391 = vunpack.c.l.b16 %v321
    %v392 = vunpack.c.l.b16 %v322
    %v393 = vunpack.c.l.b16 %v323
    %v394 = vunpack.c.l.b16 %v324
    %v395 = vunpack.c.l.b16 %v325
    %v396 = vunpack.c.l.b16 %v326
    %v397 = vunpack.c.l.b16 %v327
    %v398 = vunpack.c.l.b16 %v328
    %v399 = vunpack.c.l.b16 %v329
    %v400 = vunpack.c.l.b16 %v330
    %v401 = vunpack.c.l.b16 %v331
    %v402 = vunpack.c.l.b16 %v332
    %v403 = vunpack.c.l.b16 %v333
    %v404 = vunpack.c.l.b16 %v334
    %v405 = vunpack.c.l.b16 %v335
    %v406 = vunpack.c.l.b16 %v336
    %v407 = vunpack.c.l.b16 %v337
    %v408 = vunpack.c.l.b16 %v338
    %v409 = vunpack.c.l.b16 %v339
    %v410 = vunpack.c.l.b16 %v340
    %v411 = vunpack.c.l.b16 %v341
    %v412 = vunpack.c.l.b16 %v342
    %v413 = vunpack.c.l.b16 %v343
    %v414 = vunpack.c.l.b16 %v344
    %v415 = vunpack.c.l.b16 %v345
    %v416 = vunpack.c.l.b16 %v346
    %v417 = vunpack.c.l.b16 %v347
    %v418 = vunpack.c.l.b16 %v348
    %v419 = vunpack.c.l.b16 %v349
    %v420 = vpack.c.b16 %v389, %v388
    %v421 = vpack.c.b16 %v391, %v390
    %v422 = vpack.c.b16 %v393, %v392
    %v423 = vpack.c.b16 %v395, %v394
    %v424 = vpack.c.b16 %v397, %v396
    %v425 = vpack.c.b16 %v399, %v398
    %v426 = vpack.c.b16 %v401, %v400
    %v427 = vpack.c.b16 %v403, %v402
    %v428 = vpack.c.b16 %v405, %v404
    %v429 = vpack.c.b16 %v407, %v406
    %v430 = vpack.c.b16 %v409, %v408
    %v431 = vpack.c.b16 %v411, %v410
    %v432 = vpack.c.b16 %v413, %v412
    %v433 = vpack.c.b16 %v415, %v414
    %v434 = vpack.c.b16 %v417, %v416
    %v435 = vpack.c.b16 %v419, %v418
    %452 = vmatpush.bf16.xpose.msra.mxu0 %v427
    %453 = vmatpush.bf16.xpose.msra.mxu0 %v426
    %454 = vmatpush.bf16.xpose.msra.mxu0 %v425
    %455 = vmatpush.bf16.xpose.msra.mxu0 %v424
    %456 = vmatpush.bf16.xpose.msra.mxu0 %v423
    %457 = vmatpush.bf16.xpose.msra.mxu0 %v422
    %458 = vmatpush.bf16.xpose.msra.mxu0 %v421
    %459 = vmatpush.bf16.xpose.msra.mxu0 %v420
    %460 = vmatmul.bf16.gmra.mxu0 %v317
    %v461 = vpop.f32.mrf.mxu0
    %v462 = vadd.f32 %v352, %v461
    %v463 = vpop.f32.mrf.mxu0
    %v464 = vadd.f32 %v352, %v463
    %465 = vdwg.mxu0
    %466 = vmatpush.bf16.xpose.msra.mxu0 %v435
    %467 = vmatpush.bf16.xpose.msra.mxu0 %v434
    %468 = vmatpush.bf16.xpose.msra.mxu0 %v433
    %469 = vmatpush.bf16.xpose.msra.mxu0 %v432
    %470 = vmatpush.bf16.xpose.msra.mxu0 %v431
    %471 = vmatpush.bf16.xpose.msra.mxu0 %v430
    %472 = vmatpush.bf16.xpose.msra.mxu0 %v429
    %473 = vmatpush.bf16.xpose.msra.mxu0 %v428
    %474 = vmatmul.bf16.gmra.mxu0 %v317
    %v475 = vpop.f32.mrf.mxu0
    %v476 = vadd.f32 %v353, %v475
    %v477 = vpop.f32.mrf.mxu0
    %v478 = vadd.f32 %v353, %v477
    %479 = vdwg.mxu0
    %v480 = vmul.f32 %v462, 0.5
    %v481 = vmul.f32 %v476, 0.5
    %v482 = vmul.f32 %v464, 0.5
    %v483 = vmul.f32 %v478, 0.5
    %v484 = vtanh.pop %v480
    %v485 = vtanh.pop %v481
    %v486 = vtanh.pop %v482
    %v487 = vtanh.pop %v483
    %v488 = vadd.f32 %v484, 1.0
    %v489 = vadd.f32 %v485, 1.0
    %v490 = vadd.f32 %v486, 1.0
    %v491 = vadd.f32 %v487, 1.0
    %v492 = vmul.f32 %v488, 0.5
    %v493 = vmul.f32 %v489, 0.5
    %v494 = vmul.f32 %v490, 0.5
    %v495 = vmul.f32 %v491, 0.5
    %496 = vst [vmem:[#allocation11] sm:$0xff] %v492
    %497 = vst [vmem:[#allocation11 + $0x8] sm:$0xff] %v493
    %498 = vst [vmem:[#allocation11 + $0x10] sm:$0xff] %v494
    %499 = vst [vmem:[#allocation11 + $0x18] sm:$0xff] %v495
    // Predicated region
    $region50: #{tpu_custom_call.1} parent=1 // pred_check
      _
    $region51: #{tpu_custom_call.1} parent=1 // pred_check_branch
      %501 = sbr.rel (0) target = $region53
    $region52: #{tpu_custom_call.1} parent=1 // pred_region
      %503 = vsyncadd [#allocation4], 0
      %s504 = sshll.u32 [#allocation11], 4
      %s505 = int_to_ptr.vmem [resolvable:$true] %s504
      %s506 = sshll.u32 %s7, 4
      %s507 = int_to_ptr.hbm [resolvable:$true] %s506
      %512 = dma.vmem_to_hbm [thread:$0]  %s505, 512, %s507, [#allocation4], 256, 256, 16
    $region53: #{tpu_custom_call.1} parent=1 // pred_fallthru
      _
    // Predicated region
    $region54: #{tpu_custom_call.1} parent=1 // pred_check
      _
    $region55: #{tpu_custom_call.1} parent=1 // pred_check_branch
      %514 = sbr.rel (0) target = $region57
    $region56: #{tpu_custom_call.1} parent=1 // pred_region
      %516 = dma.done [#allocation4], 512
    $region57: #{tpu_custom_call.1} parent=1 // pred_fallthru
      _
    %517 = vsyncpa [#allocation3], 1
    %518 = vsyncpa [#allocation6], 1
    %519 = vsyncpa [#allocation9], 1
    %520 = vsyncpa [#allocation4], 1

</llo_original>
